<compile_context>
chip_gen: v5e
topology: v5e:2x2
jax: 0.10.0
libtpu: 0.0.40
codegen_flags: <defaults>
</compile_context>

<pallas_src>
import functools
import numpy as np
import jax
import jax.numpy as jnp
from jax.experimental import pallas as pl
from jax.experimental.pallas import tpu as pltpu


def _diffusion_loss_kernel(
    # scalar-prefetch (SMEM) refs, shape (B,)
    t_ref, alpha_ref, sigma_ref, lw_ref,
    # VMEM inputs
    x_ref, eps_ref, w1t_ref, b1_ref, tp_ref, w2t_ref, b2_ref,
    # VMEM output (per-batch (8,128) block)
    out_ref,
    # VMEM scratch accumulator (C, Lt)
    acc_ref,
    *, inv_elems):
    bi = pl.program_id(0)          # batch index ("parallel")
    li = pl.program_id(1)          # L-tile index ("arbitrary" / reduction)
    n_l = pl.num_programs(1)

    # per-batch scalars from SMEM (no cross-lane picks)
    alpha = alpha_ref[bi]
    sigma = sigma_ref[bi]
    t_b = t_ref[bi]

    x = x_ref[...]                 # (C, Lt) lane-dense in L
    eps = eps_ref[...]             # (C, Lt)

    # forward diffusion mixing and velocity targets
    x_t = alpha * x + sigma * eps          # (C, Lt)
    targets = alpha * eps - sigma * x      # (C, Lt)

    # synthetic time-conditioned pointwise (1x1-conv style) MLP over channels,
    # contracted so the MXU N dim is the lane-dense L tile.
    h = jnp.dot(w1t_ref[...], x_t, preferred_element_type=jnp.float32)    # (H, Lt)
    h = jnp.maximum(h + (b1_ref[...] + tp_ref[...] * t_b), 0.0)           # relu
    preds = jnp.dot(w2t_ref[...], h, preferred_element_type=jnp.float32)  # (C, Lt)
    preds = preds + b2_ref[...]

    # loss_fn: MSE with reduction='none'
    sq = (preds - targets) ** 2            # (C, Lt)

    @pl.when(li == 0)
    def _init():
        acc_ref[...] = jnp.zeros_like(acc_ref)

    # lane-dense VPU accumulation; cross-lane reduce deferred to finalize
    acc_ref[...] += sq

    @pl.when(li == n_l - 1)
    def _finalize():
        lane_sum = jnp.sum(acc_ref[...], axis=1, keepdims=True)   # (C, 1)
        total = jnp.sum(lane_sum, axis=0, keepdims=True)          # (1, 1)
        wloss = lw_ref[bi] * inv_elems * total                    # weighted per-batch mean
        out_ref[...] = jnp.broadcast_to(wloss, out_ref.shape)     # full unmasked store


def _pick_l_tile(L, C, max_tile=4096, vmem_budget_bytes=8 * 1024 * 1024):
    """Largest lane-aligned tile dividing L that fits the VMEM budget.

    Per lane column the kernel holds (in f32): x + eps double-buffered
    (2 inputs x 2 buffers) plus the accumulator => 5 * C * 4 bytes.
    """
    per_col = 4 * C * 5
    cap = min(max_tile, max(128, vmem_budget_bytes // max(per_col, 1)))
    cap -= cap % 128
    if L <= cap or L % 128 != 0:
        return L
    t = cap
    while t >= 128:
        if L % t == 0:
            return t
        t -= 128
    return L


def _schedule_scalars(t32, scheduler_name, snr_gamma):
    """(B,) alphas / sigmas / Min-SNR-gamma loss weights for the given schedule."""
    name = scheduler_name.lower() if isinstance(scheduler_name, str) else scheduler_name
    if name == "linear":
        start, end = 1e-4, 0.02
        ss = (end - start) * t32 + start
        sigmas = jnp.sqrt(ss)
        alphas = jnp.sqrt(1.0 - ss)
        snrs = 1.0 / jnp.maximum(ss, 1e-20) - 1.0
    else:
        if name == "mousai":
            a, b = 0.5 * np.pi, 0.0
        elif name == "noise2music":
            a = np.arctan(np.e ** 10) - np.arctan(np.e ** (-10))
            b = np.arctan(np.e ** (-10))
        else:
            raise ValueError(f"unknown scheduler `{scheduler_name}`")
        theta = a * t32 + b
        alphas = jnp.cos(theta)
        sigmas = jnp.sin(theta)
        snrs = 1.0 / jnp.maximum(sigmas * sigmas, 1e-20) - 1.0
    loss_w = jnp.minimum(snrs, snr_gamma) / (snrs + 1.0)
    return alphas, sigmas, loss_w


def gaussian_diffusion_forward(x_bcl, t, eps_bcl, params, snr_gamma=5.0,
                               scheduler_name="mousai", max_l_tile=4096):
    """x_bcl: (B, C, L) like the PyTorch module; t: (B,); eps_bcl: (B, C, L)."""
    B, C, L = x_bcl.shape
    H = params["w1"].shape[1]

    x = x_bcl.astype(jnp.float32)
    eps = eps_bcl.astype(jnp.float32)
    t32 = t.astype(jnp.float32)

    # (B,)-sized noise-schedule scalars, computed once here (trivial XLA op)
    # and consumed from SMEM inside the kernel.
    alphas, sigmas, loss_w = _schedule_scalars(t32, scheduler_name, snr_gamma)

    # transpose/reshape the tiny weights once so matmuls contract on sublanes
    w1t = params["w1"].T.astype(jnp.float32)                 # (H, C)
    w2t = params["w2"].T.astype(jnp.float32)                 # (C, H)
    b1c = params["b1"].reshape(H, 1).astype(jnp.float32)     # (H, 1)
    tpc = params["tp"].reshape(H, 1).astype(jnp.float32)     # (H, 1)
    b2c = params["b2"].reshape(C, 1).astype(jnp.float32)     # (C, 1)

    Lt = _pick_l_tile(L, C, max_tile=max_l_tile)
    n_lt = L // Lt

    kernel = functools.partial(_diffusion_loss_kernel, inv_elems=1.0 / float(C * L))

    grid_spec = pltpu.PrefetchScalarGridSpec(
        num_scalar_prefetch=4,                 # t, alphas, sigmas, loss_w -> SMEM
        grid=(B, n_lt),
        in_specs=[
            pl.BlockSpec((None, C, Lt), lambda bi, li, *_: (bi, 0, li)),   # x  (B,C,L)
            pl.BlockSpec((None, C, Lt), lambda bi, li, *_: (bi, 0, li)),   # eps
            pl.BlockSpec((H, C), lambda bi, li, *_: (0, 0)),               # w1^T (resident)
            pl.BlockSpec((H, 1), lambda bi, li, *_: (0, 0)),               # b1
            pl.BlockSpec((H, 1), lambda bi, li, *_: (0, 0)),               # tp
            pl.BlockSpec((C, H), lambda bi, li, *_: (0, 0)),               # w2^T
            pl.BlockSpec((C, 1), lambda bi, li, *_: (0, 0)),               # b2
        ],
        out_specs=pl.BlockSpec((None, 8, 128), lambda bi, li, *_: (bi, 0, 0)),
        scratch_shapes=[pltpu.VMEM((C, Lt), jnp.float32)],
    )

    flops = 4 * B * L * C * H + 12 * B * C * L
    bytes_accessed = 2 * B * C * L * 4 + (H * C + C * H + 2 * H + C) * 4 + B * 8 * 128 * 4

    out = pl.pallas_call(
        kernel,
        grid_spec=grid_spec,
        out_shape=jax.ShapeDtypeStruct((B, 8, 128), jnp.float32),
        compiler_params=pltpu.CompilerParams(
            dimension_semantics=("parallel", "arbitrary"),
            vmem_limit_bytes=32 * 1024 * 1024,
        ),
        cost_estimate=pl.CostEstimate(flops=flops, transcendentals=0,
                                      bytes_accessed=bytes_accessed),
    )(t32, alphas, sigmas, loss_w, x, eps, w1t, b1c, tpc, w2t, b2c)

    # per-batch weighted means -> final mean over batch (trivial (B,) reduce)
    return jnp.mean(out[:, 0, 0])


def _reference(x_bcl, t, eps_bcl, params, snr_gamma=5.0):
    """Pure-JAX replica of GaussianDiffusion.forward (same synthetic net/loss)."""
    a = 0.5 * np.pi
    alphas = jnp.cos(a * t)[:, None, None]
    sigmas = jnp.sin(a * t)[:, None, None]
    snrs = 1.0 / jnp.maximum(jnp.sin(a * t) ** 2, 1e-20) - 1.0
    lw = jnp.minimum(snrs, snr_gamma) / (snrs + 1.0)
    x_t = alphas * x_bcl + sigmas * eps_bcl
    targets = alphas * eps_bcl - sigmas * x_bcl
    h = (jnp.einsum('bcl,ch->bhl', x_t, params["w1"])
         + params["b1"][None, :, None]
         + params["tp"][None, :, None] * t[:, None, None])
    h = jnp.maximum(h, 0.0)
    preds = jnp.einsum('bhl,hc->bcl', h, params["w2"]) + params["b2"][None, :, None]
    loss = (preds - targets) ** 2
    loss = lw * loss.mean(axis=(1, 2))
    return loss.mean()


if __name__ == "__main__":
    # TODO(synk): the module's arbitrary `net` is replaced by a synthetic
    # time-conditioned pointwise MLP; the DDIM `sample()` path is not ported.
    B, C, L, H = 2, 4, 16, 32
    key = jax.random.PRNGKey(0)
    kx, kt, ke, k1, k2, k3, k4, k5 = jax.random.split(key, 8)

    # inputs (torch.rand / torch.randn replaced by deterministic jax.random glue)
    x = jax.random.normal(kx, (B, C, L), dtype=jnp.float32)
    t = jax.random.uniform(kt, (B,), dtype=jnp.float32)
    eps = jax.random.normal(ke, (B, C, L), dtype=jnp.float32)

    # deterministic synthetic time-conditioned pointwise velocity net
    params = {
        "w1": jax.random.normal(k1, (C, H), dtype=jnp.float32) / np.sqrt(C),
        "b1": 0.1 * jax.random.normal(k4, (H,), dtype=jnp.float32),
        "tp": jax.random.normal(k2, (H,), dtype=jnp.float32),
        "w2": jax.random.normal(k3, (H, C), dtype=jnp.float32) / np.sqrt(H),
        "b2": 0.1 * jax.random.normal(k5, (C,), dtype=jnp.float32),
    }

    loss = gaussian_diffusion_forward(x, t, eps, params, snr_gamma=5.0)
    loss = jax.block_until_ready(loss)
    ref = _reference(x, t, eps, params, snr_gamma=5.0)
    assert np.allclose(np.asarray(loss), np.asarray(ref), rtol=1e-4, atol=1e-5), (
        float(loss), float(ref))

    # second check exercising the multi-L-tile accumulator path (n_lt > 1)
    L2 = 256
    x2 = jax.random.normal(kx, (B, C, L2), dtype=jnp.float32)
    eps2 = jax.random.normal(ke, (B, C, L2), dtype=jnp.float32)
    loss2 = gaussian_diffusion_forward(x2, t, eps2, params, snr_gamma=5.0,
                                       max_l_tile=128)
    loss2 = jax.block_until_ready(loss2)
    ref2 = _reference(x2, t, eps2, params, snr_gamma=5.0)
    assert np.allclose(np.asarray(loss2), np.asarray(ref2), rtol=1e-4, atol=1e-5), (
        float(loss2), float(ref2))

    print("KERNEL_OK")
</pallas_src>

<mosaic_0001>
module attributes {stable_mosaic.version = 11 : i64} {
  func.func @_diffusion_loss_kernel(%arg0: i32, %arg1: i32, %arg2: memref<2xf32, #tpu.memory_space<smem>>, %arg3: memref<2xf32, #tpu.memory_space<smem>>, %arg4: memref<2xf32, #tpu.memory_space<smem>>, %arg5: memref<2xf32, #tpu.memory_space<smem>>, %arg6: memref<1x4x16xf32, #tpu.memory_space<vmem>>, %arg7: memref<1x4x16xf32, #tpu.memory_space<vmem>>, %arg8: memref<32x4xf32, #tpu.memory_space<vmem>>, %arg9: memref<32x1xf32, #tpu.memory_space<vmem>>, %arg10: memref<32x1xf32, #tpu.memory_space<vmem>>, %arg11: memref<4x32xf32, #tpu.memory_space<vmem>>, %arg12: memref<4x1xf32, #tpu.memory_space<vmem>>, %arg13: memref<1x8x128xf32, #tpu.memory_space<vmem>>, %arg14: memref<4x16xf32, #tpu.memory_space<vmem>>) attributes {dimension_semantics = [#tpu.dimension_semantics<parallel>, #tpu.dimension_semantics<arbitrary>], iteration_bounds = array<i64: 2, 1>, scalar_prefetch = 4 : i64, scratch_operands = 1 : i64, tpu.core_type = #tpu.core_type<tc>, window_params = [{transform_indices = @transform_0, window_bounds = array<i64: 1, 4, 16>}, {transform_indices = @transform_1, window_bounds = array<i64: 1, 4, 16>}, {pipeline_mode = #tpu.pipeline_mode<synchronous>, transform_indices = @transform_2, window_bounds = array<i64: 32, 4>}, {pipeline_mode = #tpu.pipeline_mode<synchronous>, transform_indices = @transform_3, window_bounds = array<i64: 32, 1>}, {pipeline_mode = #tpu.pipeline_mode<synchronous>, transform_indices = @transform_4, window_bounds = array<i64: 32, 1>}, {pipeline_mode = #tpu.pipeline_mode<synchronous>, transform_indices = @transform_5, window_bounds = array<i64: 4, 32>}, {pipeline_mode = #tpu.pipeline_mode<synchronous>, transform_indices = @transform_6, window_bounds = array<i64: 4, 1>}, {transform_indices = @transform_7, window_bounds = array<i64: 1, 8, 128>}]} {
    %0 = arith.index_cast %arg0 : i32 to index
    %1 = memref.load %arg3[%0] : memref<2xf32, #tpu.memory_space<smem>>
    %2 = arith.index_cast %arg0 : i32 to index
    %3 = memref.load %arg4[%2] : memref<2xf32, #tpu.memory_space<smem>>
    %4 = arith.index_cast %arg0 : i32 to index
    %5 = memref.load %arg2[%4] : memref<2xf32, #tpu.memory_space<smem>>
    %c0 = arith.constant 0 : index
    %c0_0 = arith.constant 0 : index
    %c0_1 = arith.constant 0 : index
    %6 = vector.load %arg6[%c0, %c0_0, %c0_1] : memref<1x4x16xf32, #tpu.memory_space<vmem>>, vector<1x4x16xf32>
    %7 = vector.shape_cast %6 : vector<1x4x16xf32> to vector<4x16xf32>
    %c0_2 = arith.constant 0 : index
    %c0_3 = arith.constant 0 : index
    %c0_4 = arith.constant 0 : index
    %8 = vector.load %arg7[%c0_2, %c0_3, %c0_4] : memref<1x4x16xf32, #tpu.memory_space<vmem>>, vector<1x4x16xf32>
    %9 = vector.shape_cast %8 : vector<1x4x16xf32> to vector<4x16xf32>
    %10 = vector.broadcast %1 : f32 to vector<4x16xf32>
    %11 = arith.mulf %10, %7 : vector<4x16xf32>
    %12 = vector.broadcast %3 : f32 to vector<4x16xf32>
    %13 = arith.mulf %12, %9 : vector<4x16xf32>
    %14 = arith.addf %11, %13 : vector<4x16xf32>
    %15 = vector.broadcast %1 : f32 to vector<4x16xf32>
    %16 = arith.mulf %15, %9 : vector<4x16xf32>
    %17 = vector.broadcast %3 : f32 to vector<4x16xf32>
    %18 = arith.mulf %17, %7 : vector<4x16xf32>
    %19 = arith.subf %16, %18 : vector<4x16xf32>
    %c0_5 = arith.constant 0 : index
    %c0_6 = arith.constant 0 : index
    %20 = vector.load %arg8[%c0_5, %c0_6] : memref<32x4xf32, #tpu.memory_space<vmem>>, vector<32x4xf32>
    %cst = arith.constant dense<0.000000e+00> : vector<32x16xf32>
    %21 = tpu.matmul %20, %14, %cst {dimension_numbers = #tpu.dot_dimension_numbers<[1], [0], [0], [1], [0, 0, 1, 1], [], []>} : vector<32x4xf32>, vector<4x16xf32>, vector<32x16xf32> -> vector<32x16xf32>
    %c0_7 = arith.constant 0 : index
    %c0_8 = arith.constant 0 : index
    %22 = vector.load %arg9[%c0_7, %c0_8] : memref<32x1xf32, #tpu.memory_space<vmem>>, vector<32x1xf32>
    %c0_9 = arith.constant 0 : index
    %c0_10 = arith.constant 0 : index
    %23 = vector.load %arg10[%c0_9, %c0_10] : memref<32x1xf32, #tpu.memory_space<vmem>>, vector<32x1xf32>
    %24 = vector.broadcast %5 : f32 to vector<32x1xf32>
    %25 = arith.mulf %23, %24 : vector<32x1xf32>
    %26 = arith.addf %22, %25 : vector<32x1xf32>
    %27 = vector.broadcast %26 : vector<32x1xf32> to vector<32x16xf32>
    %28 = arith.addf %21, %27 : vector<32x16xf32>
    %cst_11 = arith.constant 0.000000e+00 : f32
    %29 = vector.broadcast %cst_11 : f32 to vector<32x16xf32>
    %30 = arith.maximumf %28, %29 : vector<32x16xf32>
    %c0_12 = arith.constant 0 : index
    %c0_13 = arith.constant 0 : index
    %31 = vector.load %arg11[%c0_12, %c0_13] : memref<4x32xf32, #tpu.memory_space<vmem>>, vector<4x32xf32>
    %cst_14 = arith.constant dense<0.000000e+00> : vector<4x16xf32>
    %32 = tpu.matmul %31, %30, %cst_14 {dimension_numbers = #tpu.dot_dimension_numbers<[1], [0], [0], [1], [0, 0, 1, 1], [], []>} : vector<4x32xf32>, vector<32x16xf32>, vector<4x16xf32> -> vector<4x16xf32>
    %c0_15 = arith.constant 0 : index
    %c0_16 = arith.constant 0 : index
    %33 = vector.load %arg12[%c0_15, %c0_16] : memref<4x1xf32, #tpu.memory_space<vmem>>, vector<4x1xf32>
    %34 = vector.broadcast %33 : vector<4x1xf32> to vector<4x16xf32>
    %35 = arith.addf %32, %34 : vector<4x16xf32>
    %36 = arith.subf %35, %19 : vector<4x16xf32>
    %37 = arith.mulf %36, %36 : vector<4x16xf32>
    %c0_i32 = arith.constant 0 : i32
    %38 = arith.cmpi eq, %arg1, %c0_i32 : i32
    %39 = arith.extui %38 : i1 to i32
    %c0_i32_17 = arith.constant 0 : i32
    %40 = arith.cmpi ne, %39, %c0_i32_17 : i32
    scf.if %40 {
      %cst_24 = arith.constant 0.000000e+00 : f32
      %47 = vector.broadcast %cst_24 : f32 to vector<4x16xf32>
      %c0_25 = arith.constant 0 : index
      %c0_26 = arith.constant 0 : index
      %48 = vector.load %arg14[%c0_25, %c0_26] : memref<4x16xf32, #tpu.memory_space<vmem>>, vector<4x16xf32>
      tpu.vector_store %arg14[%c0_25, %c0_26], %47 {strides = array<i32>} : memref<4x16xf32, #tpu.memory_space<vmem>>, vector<4x16xf32>,
    } else {
    }
    %c0_18 = arith.constant 0 : index
    %c0_19 = arith.constant 0 : index
    %41 = vector.load %arg14[%c0_18, %c0_19] : memref<4x16xf32, #tpu.memory_space<vmem>>, vector<4x16xf32>
    %42 = arith.addf %41, %37 : vector<4x16xf32>
    %c0_20 = arith.constant 0 : index
    %c0_21 = arith.constant 0 : index
    %43 = vector.load %arg14[%c0_20, %c0_21] : memref<4x16xf32, #tpu.memory_space<vmem>>, vector<4x16xf32>
    tpu.vector_store %arg14[%c0_20, %c0_21], %42 {strides = array<i32>} : memref<4x16xf32, #tpu.memory_space<vmem>>, vector<4x16xf32>,
    %c0_i32_22 = arith.constant 0 : i32
    %44 = arith.cmpi eq, %arg1, %c0_i32_22 : i32
    %45 = arith.extui %44 : i1 to i32
    %c0_i32_23 = arith.constant 0 : i32
    %46 = arith.cmpi ne, %45, %c0_i32_23 : i32
    scf.if %46 {
      %c0_24 = arith.constant 0 : index
      %c0_25 = arith.constant 0 : index
      %47 = vector.load %arg14[%c0_24, %c0_25] : memref<4x16xf32, #tpu.memory_space<vmem>>, vector<4x16xf32>
      %cst_26 = arith.constant dense<0.000000e+00> : vector<4xf32>
      %48 = vector.multi_reduction <add>, %47, %cst_26 [1] : vector<4x16xf32> to vector<4xf32>
      %49 = vector.shape_cast %48 : vector<4xf32> to vector<4x1xf32>
      %cst_27 = arith.constant dense<0.000000e+00> : vector<1xf32>
      %50 = vector.multi_reduction <add>, %49, %cst_27 [0] : vector<4x1xf32> to vector<1xf32>
      %51 = vector.shape_cast %50 : vector<1xf32> to vector<1x1xf32>
      %52 = arith.index_cast %arg0 : i32 to index
      %53 = memref.load %arg5[%52] : memref<2xf32, #tpu.memory_space<smem>>
      %cst_28 = arith.constant 1.562500e-02 : f32
      %54 = arith.mulf %53, %cst_28 : f32
      %55 = vector.broadcast %54 : f32 to vector<1x1xf32>
      %56 = arith.mulf %55, %51 : vector<1x1xf32>
      %57 = vector.shape_cast %56 : vector<1x1xf32> to vector<1x1xf32>
      %58 = vector.broadcast %57 : vector<1x1xf32> to vector<8x128xf32>
      %c0_29 = arith.constant 0 : index
      %c0_30 = arith.constant 0 : index
      %c0_31 = arith.constant 0 : index
      %59 = vector.load %arg13[%c0_29, %c0_30, %c0_31] : memref<1x8x128xf32, #tpu.memory_space<vmem>>, vector<1x8x128xf32>
      %60 = vector.shape_cast %59 : vector<1x8x128xf32> to vector<8x128xf32>
      %61 = vector.shape_cast %58 : vector<8x128xf32> to vector<1x8x128xf32>
      tpu.vector_store %arg13[%c0_29, %c0_30, %c0_31], %61 {strides = array<i32>} : memref<1x8x128xf32, #tpu.memory_space<vmem>>, vector<1x8x128xf32>,
    } else {
    }
    return
  }
  func.func @transform_0(%arg0: i32, %arg1: i32, %arg2: memref<2xf32, #tpu.memory_space<smem>>, %arg3: memref<2xf32, #tpu.memory_space<smem>>, %arg4: memref<2xf32, #tpu.memory_space<smem>>, %arg5: memref<2xf32, #tpu.memory_space<smem>>) -> (i32, i32, i32) {
    %c0_i32 = arith.constant 0 : i32
    %c0_i32_0 = arith.constant 0 : i32
    return %arg0, %c0_i32, %arg1 : i32, i32, i32
  }
  func.func @transform_1(%arg0: i32, %arg1: i32, %arg2: memref<2xf32, #tpu.memory_space<smem>>, %arg3: memref<2xf32, #tpu.memory_space<smem>>, %arg4: memref<2xf32, #tpu.memory_space<smem>>, %arg5: memref<2xf32, #tpu.memory_space<smem>>) -> (i32, i32, i32) {
    %c0_i32 = arith.constant 0 : i32
    %c0_i32_0 = arith.constant 0 : i32
    return %arg0, %c0_i32, %arg1 : i32, i32, i32
  }
  func.func @transform_2(%arg0: i32, %arg1: i32, %arg2: memref<2xf32, #tpu.memory_space<smem>>, %arg3: memref<2xf32, #tpu.memory_space<smem>>, %arg4: memref<2xf32, #tpu.memory_space<smem>>, %arg5: memref<2xf32, #tpu.memory_space<smem>>) -> (i32, i32) {
    %c0_i32 = arith.constant 0 : i32
    %c0_i32_0 = arith.constant 0 : i32
    %c0_i32_1 = arith.constant 0 : i32
    return %c0_i32, %c0_i32_0 : i32, i32
  }
  func.func @transform_3(%arg0: i32, %arg1: i32, %arg2: memref<2xf32, #tpu.memory_space<smem>>, %arg3: memref<2xf32, #tpu.memory_space<smem>>, %arg4: memref<2xf32, #tpu.memory_space<smem>>, %arg5: memref<2xf32, #tpu.memory_space<smem>>) -> (i32, i32) {
    %c0_i32 = arith.constant 0 : i32
    %c0_i32_0 = arith.constant 0 : i32
    %c0_i32_1 = arith.constant 0 : i32
    return %c0_i32, %c0_i32_0 : i32, i32
  }
  func.func @transform_4(%arg0: i32, %arg1: i32, %arg2: memref<2xf32, #tpu.memory_space<smem>>, %arg3: memref<2xf32, #tpu.memory_space<smem>>, %arg4: memref<2xf32, #tpu.memory_space<smem>>, %arg5: memref<2xf32, #tpu.memory_space<smem>>) -> (i32, i32) {
    %c0_i32 = arith.constant 0 : i32
    %c0_i32_0 = arith.constant 0 : i32
    %c0_i32_1 = arith.constant 0 : i32
    return %c0_i32, %c0_i32_0 : i32, i32
  }
  func.func @transform_5(%arg0: i32, %arg1: i32, %arg2: memref<2xf32, #tpu.memory_space<smem>>, %arg3: memref<2xf32, #tpu.memory_space<smem>>, %arg4: memref<2xf32, #tpu.memory_space<smem>>, %arg5: memref<2xf32, #tpu.memory_space<smem>>) -> (i32, i32) {
    %c0_i32 = arith.constant 0 : i32
    %c0_i32_0 = arith.constant 0 : i32
    %c0_i32_1 = arith.constant 0 : i32
    return %c0_i32, %c0_i32_0 : i32, i32
  }
  func.func @transform_6(%arg0: i32, %arg1: i32, %arg2: memref<2xf32, #tpu.memory_space<smem>>, %arg3: memref<2xf32, #tpu.memory_space<smem>>, %arg4: memref<2xf32, #tpu.memory_space<smem>>, %arg5: memref<2xf32, #tpu.memory_space<smem>>) -> (i32, i32) {
    %c0_i32 = arith.constant 0 : i32
    %c0_i32_0 = arith.constant 0 : i32
    %c0_i32_1 = arith.constant 0 : i32
    return %c0_i32, %c0_i32_0 : i32, i32
  }
  func.func @transform_7(%arg0: i32, %arg1: i32, %arg2: memref<2xf32, #tpu.memory_space<smem>>, %arg3: memref<2xf32, #tpu.memory_space<smem>>, %arg4: memref<2xf32, #tpu.memory_space<smem>>, %arg5: memref<2xf32, #tpu.memory_space<smem>>) -> (i32, i32, i32) {
    %c0_i32 = arith.constant 0 : i32
    %c0_i32_0 = arith.constant 0 : i32
    %c0_i32_1 = arith.constant 0 : i32
    return %arg0, %c0_i32, %c0_i32_0 : i32, i32, i32
  }
}

</mosaic_0001>

<llo_original>
// kernel: tpu_custom_call.1
$region0: #{tpu_custom_call.1}
  #allocation0 [shape = 'u32[]', space=smem, size = 0x4, offset = 0x4, fixed_abs, tag = 'smem constant byte address 0x4 - core index']
  #allocation1 [shape = 'u32[72,128]{1,0:T(1,128)}', space=vmem, size = 0x9000, scoped, tag = 'internal scratch']
  #allocation2 [shape = 'f32[4,16]{1,0:T(4,128)}', space=vmem, size = 0x800, scoped, tag = 'scratch operand']
  #allocation3 [shape = 's32[1]{0}', space=sflag, size = 0x4, scoped, tag = 'scoped memory for tpu_custom_call.1']
  #allocation4 [shape = 'u8[512]{0}', space=smem, size = 0x200, scoped, tag = 'prefetched SMEM operand 0']
  #allocation5 [shape = 'u8[512]{0}', space=smem, size = 0x200, scoped, tag = 'prefetched SMEM operand 1']
  #allocation6 [shape = 'u8[512]{0}', space=smem, size = 0x200, scoped, tag = 'prefetched SMEM operand 2']
  #allocation7 [shape = 'u8[512]{0}', space=smem, size = 0x200, scoped, tag = 'prefetched SMEM operand 3']
  %s0 = inlined_call_operand.vmem [shape: f32[2], index: 0, kind: input, shape index: {}]
  %s1 = inlined_call_operand.vmem [shape: f32[2], index: 1, kind: input, shape index: {}]
  %s2 = inlined_call_operand.vmem [shape: f32[2], index: 2, kind: input, shape index: {}]
  %s3 = inlined_call_operand.vmem [shape: f32[2], index: 3, kind: input, shape index: {}]
  %s4 = inlined_call_operand.vmem [shape: f32[2,4,16], index: 4, kind: input, shape index: {}]
  %s5 = inlined_call_operand.vmem [shape: f32[2,4,16], index: 5, kind: input, shape index: {}]
  %s6 = inlined_call_operand.vmem [shape: f32[32,4], index: 6, kind: input, shape index: {}]
  %s7 = inlined_call_operand.vmem [shape: f32[32,1], index: 7, kind: input, shape index: {}]
  %s8 = inlined_call_operand.vmem [shape: f32[32,1], index: 8, kind: input, shape index: {}]
  %s9 = inlined_call_operand.vmem [shape: f32[4,32], index: 9, kind: input, shape index: {}]
  %s10 = inlined_call_operand.vmem [shape: f32[4,1], index: 10, kind: input, shape index: {}]
  %s11 = inlined_call_operand.hbm [shape: f32[2,8,128], index: 11, kind: output, shape index: {}]
  %s12 = sld [smem:[#allocation0]]
  $region69: #{tpu_custom_call.1} parent=0
    _
  %s14 = ssub.s32 1, %s12
  %s15 = scalar_select 0, %s14, %s12
  %s17 = sshll.u32 %s0, 4
  %s18 = int_to_ptr.vmem [resolvable:$true] %s17
  %20 = dma.vmem_to_smem %s18, 16, [#allocation4], [#allocation3]
  %s22 = sshll.u32 %s1, 4
  %s23 = int_to_ptr.vmem [resolvable:$true] %s22
  %25 = dma.vmem_to_smem %s23, 16, [#allocation5], [#allocation3]
  %s27 = sshll.u32 %s2, 4
  %s28 = int_to_ptr.vmem [resolvable:$true] %s27
  %30 = dma.vmem_to_smem %s28, 16, [#allocation6], [#allocation3]
  %s32 = sshll.u32 %s3, 4
  %s33 = int_to_ptr.vmem [resolvable:$true] %s32
  %35 = dma.vmem_to_smem %s33, 16, [#allocation7], [#allocation3]
  %37 = dma.done [#allocation3], 64
  %38 = sfence
  $region1: #{tpu_custom_call.1} parent=0
    #allocation8 [shape = 'u8[8192]{0}', space=vmem, size = 0x2000, scoped, tag = 'output window, operand 0']
    #allocation9 [shape = 's32[2]{0}', space=sflag, size = 0x8, scoped, tag = 'scoped memory for tpu_custom_call.1']
    %39 = vsyncpa [#allocation9], 0
    %s40 = scalar_lea.sflag [#allocation9], 1
    %41 = vsyncpa %s40, 0
    loop: start=0, step=1, limit=4
    $region2: #{tpu_custom_call.1} parent=1 // loop_pre_header
      _
    $region3: #{tpu_custom_call.1} parent=1 // loop_header
      %s43 = sphi 0, %s47
      %p44 = scmp.ge.s32.totalorder %s43, 4
      %s50 = sphi 0, %s62
      %s51 = sphi 0, %s58
      %s52 = sphi 0, %s50
      %s53 = sphi 0, %s51
      %s54 = sphi 0, %s52
      %s55 = sphi 0, %s53
      %s67 = sphi 0, %s69
      %s70 = sphi 0, %s67
      %s71 = sphi 0, %s70
      %s87 = sphi 0, %s71
      %s95 = sphi 0, %s97
      %s98 = sphi 0, %s95
      %s99 = sphi 0, %s98
      %s115 = sphi 0, %s99
      %s119 = sphi 0, %s119
      %s121 = sphi 0, %s119
      %s122 = sphi 0, %s121
      %s136 = sphi 0, %s122
      %s140 = sphi 0, %s140
      %s142 = sphi 0, %s140
      %s143 = sphi 0, %s142
      %s157 = sphi 0, %s143
      %s161 = sphi 0, %s161
      %s163 = sphi 0, %s161
      %s164 = sphi 0, %s163
      %s178 = sphi 0, %s164
      %s182 = sphi 0, %s182
      %s184 = sphi 0, %s182
      %s185 = sphi 0, %s184
      %s199 = sphi 0, %s185
      %s203 = sphi 0, %s203
      %s205 = sphi 0, %s203
      %s206 = sphi 0, %s205
      %s220 = sphi 0, %s206
      %s226 = sphi 0, %s228
      %s229 = sphi 0, %s226
      %s230 = sphi 0, %s229
      %s246 = sphi 0, %s230
    $region4: #{tpu_custom_call.1} parent=1 // loop_header_branch
      %46 = sbr.rel (%p44) target = $region8
    $region5: #{tpu_custom_call.1} parent=1 // loop_body
      %s48 = ssub.s32 %s43, 1
      %s49 = ssub.s32 %s43, 2
      %s56 = sadd.s32 1, %s51
      %p57 = scmp.ge.s32.totalorder %s56, 1
      %s58 = scalar_select %p57, 0, %s56
      %s59 = sadd.s32 1, %s50
      %s60 = scalar_select %p57, %s59, %s50
      %p61 = scmp.ge.s32.totalorder %s60, 2
      %s62 = scalar_select %p61, 0, %s60
      %s63 = ssub.s32 %s50, %s62
      %s64 = ssub.s32 %s51, %s58
      %s65 = sor.u32 %s63, %s64
      %p66 = scmp.eq.s32.totalorder %s65, 0
      %s68 = sadd.s32 %s67, 1
      %s69 = scalar_select %p66, %s67, %s68
      %p72 = pneg %p66
      %p73 = scmp.eq.s32.totalorder %s43, 1
      %p74 = por %p72, %p73
      %p75 = scmp.ne.s32.totalorder %s67, %s70
      %p76 = scmp.eq.s32.totalorder %s43, 0
      %p77 = por %p75, %p76
      %p78 = scmp.ne.s32.totalorder %s67, %s70
      %p79 = scmp.eq.s32.totalorder %s48, 1
      %p80 = por %p78, %p79
      %p81 = scmp.ne.s32.totalorder %s70, %s71
      %p82 = scmp.eq.s32.totalorder %s48, 0
      %p83 = por %p81, %p82
      %p84 = scmp.ne.s32.totalorder %s70, %s71
      %p85 = scmp.eq.s32.totalorder %s49, 1
      %p86 = por %p84, %p85
      %p88 = scmp.ne.s32.totalorder %s71, %s87
      %p89 = scmp.eq.s32.totalorder %s49, 0
      %p90 = por %p88, %p89
      %s91 = ssub.s32 %s50, %s62
      %s92 = ssub.s32 %s51, %s58
      %s93 = sor.u32 %s91, %s92
      %p94 = scmp.eq.s32.totalorder %s93, 0
      %s96 = sadd.s32 %s95, 1
      %s97 = scalar_select %p94, %s95, %s96
      %p100 = pneg %p94
      %p101 = scmp.eq.s32.totalorder %s43, 1
      %p102 = por %p100, %p101
      %p103 = scmp.ne.s32.totalorder %s95, %s98
      %p104 = scmp.eq.s32.totalorder %s43, 0
      %p105 = por %p103, %p104
      %p106 = scmp.ne.s32.totalorder %s95, %s98
      %p107 = scmp.eq.s32.totalorder %s48, 1
      %p108 = por %p106, %p107
      %p109 = scmp.ne.s32.totalorder %s98, %s99
      %p110 = scmp.eq.s32.totalorder %s48, 0
      %p111 = por %p109, %p110
      %p112 = scmp.ne.s32.totalorder %s98, %s99
      %p113 = scmp.eq.s32.totalorder %s49, 1
      %p114 = por %p112, %p113
      %p116 = scmp.ne.s32.totalorder %s99, %s115
      %p117 = scmp.eq.s32.totalorder %s49, 0
      %p118 = por %p116, %p117
      %s120 = sadd.s32 %s119, 1
      %p123 = scmp.eq.s32.totalorder %s43, 1
      %p124 = scmp.ne.s32.totalorder %s119, %s121
      %p125 = scmp.eq.s32.totalorder %s43, 0
      %p126 = por %p124, %p125
      %p127 = scmp.ne.s32.totalorder %s119, %s121
      %p128 = scmp.eq.s32.totalorder %s48, 1
      %p129 = por %p127, %p128
      %p130 = scmp.ne.s32.totalorder %s121, %s122
      %p131 = scmp.eq.s32.totalorder %s48, 0
      %p132 = por %p130, %p131
      %p133 = scmp.ne.s32.totalorder %s121, %s122
      %p134 = scmp.eq.s32.totalorder %s49, 1
      %p135 = por %p133, %p134
      %p137 = scmp.ne.s32.totalorder %s122, %s136
      %p138 = scmp.eq.s32.totalorder %s49, 0
      %p139 = por %p137, %p138
      %s141 = sadd.s32 %s140, 1
      %p144 = scmp.eq.s32.totalorder %s43, 1
      %p145 = scmp.ne.s32.totalorder %s140, %s142
      %p146 = scmp.eq.s32.totalorder %s43, 0
      %p147 = por %p145, %p146
      %p148 = scmp.ne.s32.totalorder %s140, %s142
      %p149 = scmp.eq.s32.totalorder %s48, 1
      %p150 = por %p148, %p149
      %p151 = scmp.ne.s32.totalorder %s142, %s143
      %p152 = scmp.eq.s32.totalorder %s48, 0
      %p153 = por %p151, %p152
      %p154 = scmp.ne.s32.totalorder %s142, %s143
      %p155 = scmp.eq.s32.totalorder %s49, 1
      %p156 = por %p154, %p155
      %p158 = scmp.ne.s32.totalorder %s143, %s157
      %p159 = scmp.eq.s32.totalorder %s49, 0
      %p160 = por %p158, %p159
      %s162 = sadd.s32 %s161, 1
      %p165 = scmp.eq.s32.totalorder %s43, 1
      %p166 = scmp.ne.s32.totalorder %s161, %s163
      %p167 = scmp.eq.s32.totalorder %s43, 0
      %p168 = por %p166, %p167
      %p169 = scmp.ne.s32.totalorder %s161, %s163
      %p170 = scmp.eq.s32.totalorder %s48, 1
      %p171 = por %p169, %p170
      %p172 = scmp.ne.s32.totalorder %s163, %s164
      %p173 = scmp.eq.s32.totalorder %s48, 0
      %p174 = por %p172, %p173
      %p175 = scmp.ne.s32.totalorder %s163, %s164
      %p176 = scmp.eq.s32.totalorder %s49, 1
      %p177 = por %p175, %p176
      %p179 = scmp.ne.s32.totalorder %s164, %s178
      %p180 = scmp.eq.s32.totalorder %s49, 0
      %p181 = por %p179, %p180
      %s183 = sadd.s32 %s182, 1
      %p186 = scmp.eq.s32.totalorder %s43, 1
      %p187 = scmp.ne.s32.totalorder %s182, %s184
      %p188 = scmp.eq.s32.totalorder %s43, 0
      %p189 = por %p187, %p188
      %p190 = scmp.ne.s32.totalorder %s182, %s184
      %p191 = scmp.eq.s32.totalorder %s48, 1
      %p192 = por %p190, %p191
      %p193 = scmp.ne.s32.totalorder %s184, %s185
      %p194 = scmp.eq.s32.totalorder %s48, 0
      %p195 = por %p193, %p194
      %p196 = scmp.ne.s32.totalorder %s184, %s185
      %p197 = scmp.eq.s32.totalorder %s49, 1
      %p198 = por %p196, %p197
      %p200 = scmp.ne.s32.totalorder %s185, %s199
      %p201 = scmp.eq.s32.totalorder %s49, 0
      %p202 = por %p200, %p201
      %s204 = sadd.s32 %s203, 1
      %p207 = scmp.eq.s32.totalorder %s43, 1
      %p208 = scmp.ne.s32.totalorder %s203, %s205
      %p209 = scmp.eq.s32.totalorder %s43, 0
      %p210 = por %p208, %p209
      %p211 = scmp.ne.s32.totalorder %s203, %s205
      %p212 = scmp.eq.s32.totalorder %s48, 1
      %p213 = por %p211, %p212
      %p214 = scmp.ne.s32.totalorder %s205, %s206
      %p215 = scmp.eq.s32.totalorder %s48, 0
      %p216 = por %p214, %p215
      %p217 = scmp.ne.s32.totalorder %s205, %s206
      %p218 = scmp.eq.s32.totalorder %s49, 1
      %p219 = por %p217, %p218
      %p221 = scmp.ne.s32.totalorder %s206, %s220
      %p222 = scmp.eq.s32.totalorder %s49, 0
      %p223 = por %p221, %p222
      %s224 = ssub.s32 %s50, %s62
      %p225 = scmp.eq.s32.totalorder %s224, 0
      %s227 = sadd.s32 %s226, 1
      %s228 = scalar_select %p225, %s226, %s227
      %p231 = pneg %p225
      %p232 = scmp.eq.s32.totalorder %s43, 1
      %p233 = por %p231, %p232
      %p234 = scmp.ne.s32.totalorder %s226, %s229
      %p235 = scmp.eq.s32.totalorder %s43, 0
      %p236 = por %p234, %p235
      %p237 = scmp.ne.s32.totalorder %s226, %s229
      %p238 = scmp.eq.s32.totalorder %s48, 1
      %p239 = por %p237, %p238
      %p240 = scmp.ne.s32.totalorder %s229, %s230
      %p241 = scmp.eq.s32.totalorder %s48, 0
      %p242 = por %p240, %p241
      %p243 = scmp.ne.s32.totalorder %s229, %s230
      %p244 = scmp.eq.s32.totalorder %s49, 1
      %p245 = por %p243, %p244
      %p247 = scmp.ne.s32.totalorder %s230, %s246
      %p248 = scmp.eq.s32.totalorder %s49, 0
      %p249 = por %p247, %p248
      %p250 = scmp.le.s32.totalorder 1, %s43
      %p251 = scmp.lt.s32.totalorder %s43, 3
      %p252 = pnand %p250, %p251
      %p253 = pneg %p252
      // Predicated region
      $region9: #{tpu_custom_call.1} parent=5 // pred_check
        _
      $region10: #{tpu_custom_call.1} parent=5 // pred_check_branch
        %255 = sbr.rel (%p252) target = $region12
      $region11: #{tpu_custom_call.1} parent=5 // pred_region
        %s256 = ssub.s32 %s43, 1
        // Predicated region
        $region13: #{tpu_custom_call.1} parent=11 // pred_check
          %p257 = pneg %p132
        $region14: #{tpu_custom_call.1} parent=11 // pred_check_branch
          %259 = sbr.rel (%p257) target = $region16
        $region15: #{tpu_custom_call.1} parent=11 // pred_region
          _
        $region16: #{tpu_custom_call.1} parent=11 // pred_fallthru
          _
        // Predicated region
        $region17: #{tpu_custom_call.1} parent=11 // pred_check
          %p260 = pneg %p153
        $region18: #{tpu_custom_call.1} parent=11 // pred_check_branch
          %262 = sbr.rel (%p260) target = $region20
        $region19: #{tpu_custom_call.1} parent=11 // pred_region
          _
        $region20: #{tpu_custom_call.1} parent=11 // pred_fallthru
          _
        // Predicated region
        $region21: #{tpu_custom_call.1} parent=11 // pred_check
          %p263 = pneg %p174
        $region22: #{tpu_custom_call.1} parent=11 // pred_check_branch
          %265 = sbr.rel (%p263) target = $region24
        $region23: #{tpu_custom_call.1} parent=11 // pred_region
          _
        $region24: #{tpu_custom_call.1} parent=11 // pred_fallthru
          _
        // Predicated region
        $region25: #{tpu_custom_call.1} parent=11 // pred_check
          %p266 = pneg %p195
        $region26: #{tpu_custom_call.1} parent=11 // pred_check_branch
          %268 = sbr.rel (%p266) target = $region28
        $region27: #{tpu_custom_call.1} parent=11 // pred_region
          _
        $region28: #{tpu_custom_call.1} parent=11 // pred_fallthru
          _
        // Predicated region
        $region29: #{tpu_custom_call.1} parent=11 // pred_check
          %p269 = pneg %p216
        $region30: #{tpu_custom_call.1} parent=11 // pred_check_branch
          %271 = sbr.rel (%p269) target = $region32
        $region31: #{tpu_custom_call.1} parent=11 // pred_region
          _
        $region32: #{tpu_custom_call.1} parent=11 // pred_fallthru
          _
      $region12: #{tpu_custom_call.1} parent=5 // pred_fallthru
        _
      %p272 = scmp.lt.s32.totalorder %s43, 2
      // Predicated region
      $region33: #{tpu_custom_call.1} parent=5 // pred_check
        %p273 = pneg %p272
      $region34: #{tpu_custom_call.1} parent=5 // pred_check_branch
        %275 = sbr.rel (%p273) target = $region36
      $region35: #{tpu_custom_call.1} parent=5 // pred_region
        // Predicated region
        $region37: #{tpu_custom_call.1} parent=35 // pred_check
          %p276 = pneg %p77
        $region38: #{tpu_custom_call.1} parent=35 // pred_check_branch
          %278 = sbr.rel (%p276) target = $region40
        $region39: #{tpu_custom_call.1} parent=35 // pred_region
          %p279 = scmp.lt.s32.totalorder %s50, 1
          %s280 = scalar_select %p279, %s50, 1
          %p281 = scmp.lt.s32.totalorder %s51, 0
          %s282 = scalar_select %p281, %s51, 0
          %s283 = sadd.s32 %s282, %s280
          %s284 = smul.addr %s283, 4
          %s285 = scalar_lea.vmem %s4, %s284
        $region40: #{tpu_custom_call.1} parent=35 // pred_fallthru
          _
        // Predicated region
        $region41: #{tpu_custom_call.1} parent=35 // pred_check
          %p286 = pneg %p105
        $region42: #{tpu_custom_call.1} parent=35 // pred_check_branch
          %288 = sbr.rel (%p286) target = $region44
        $region43: #{tpu_custom_call.1} parent=35 // pred_region
          %p289 = scmp.lt.s32.totalorder %s50, 1
          %s290 = scalar_select %p289, %s50, 1
          %p291 = scmp.lt.s32.totalorder %s51, 0
          %s292 = scalar_select %p291, %s51, 0
          %s293 = sadd.s32 %s292, %s290
          %s294 = smul.addr %s293, 4
          %s295 = scalar_lea.vmem %s5, %s294
        $region44: #{tpu_custom_call.1} parent=35 // pred_fallthru
          _
      $region36: #{tpu_custom_call.1} parent=5 // pred_fallthru
        _
      %p296 = scmp.le.s32.totalorder 1, %s43
      %p297 = scmp.lt.s32.totalorder %s43, 3
      %p298 = pnand %p296, %p297
      %p299 = pneg %p298
      // Predicated region
      $region45: #{tpu_custom_call.1} parent=5 // pred_check
        _
      $region46: #{tpu_custom_call.1} parent=5 // pred_check_branch
        %301 = sbr.rel (%p298) target = $region48
      $region47: #{tpu_custom_call.1} parent=5 // pred_region
        %s302 = ssub.s32 %s43, 1
        %p303 = scmp.lt.s32.totalorder %s52, 1
        %s304 = scalar_select %p303, %s52, 1
        %p305 = scmp.lt.s32.totalorder %s53, 0
        %s306 = scalar_select %p305, %s53, 0
        %s307 = sadd.s32 %s306, %s304
        %s308 = smul.addr %s307, 4
        %s309 = scalar_lea.vmem %s4, %s308
        %p310 = pneg %p83
        %p311 = pneg %p80
        %p312 = scmp.lt.s32.totalorder %s52, 1
        %s313 = scalar_select %p312, %s52, 1
        %p314 = scmp.lt.s32.totalorder %s53, 0
        %s315 = scalar_select %p314, %s53, 0
        %s316 = sadd.s32 %s315, %s313
        %s317 = smul.addr %s316, 4
        %s318 = scalar_lea.vmem %s5, %s317
        %p319 = pneg %p111
        %p320 = pneg %p108
        %p321 = pneg %p132
        %p322 = pneg %p129
        %p323 = pneg %p153
        %p324 = pneg %p150
        %p325 = pneg %p174
        %p326 = pneg %p171
        %p327 = pneg %p195
        %p328 = pneg %p192
        %p329 = pneg %p216
        %p330 = pneg %p213
        %p331 = pneg %p242
        %p332 = pneg %p239
        %s333 = sand.u32 %s229, 1
        %s334 = scalar_lea.sflag [#allocation9], %s333
        %s335 = sand.u32 %s229, 1
        %s336 = smul.addr %s335, 8
        %s337 = scalar_lea.vmem [#allocation8], %s336
        %p338 = scmp.lt.s32.totalorder %s52, 1
        %s339 = scalar_select %p338, %s52, 1
        %p340 = scmp.lt.s32.totalorder %s53, 0
        %s341 = scalar_select %p340, %s53, 0
        %s342 = sadd.s32 %s341, %s339
        %s343 = smul.addr %s342, 4
        %s344 = scalar_lea.vmem %s4, %s343
        %p345 = scmp.lt.s32.totalorder %s52, 1
        %s346 = scalar_select %p345, %s52, 1
        %p347 = scmp.lt.s32.totalorder %s53, 0
        %s348 = scalar_select %p347, %s53, 0
        %s349 = sadd.s32 %s348, %s346
        %s350 = smul.addr %s349, 4
        %s351 = scalar_lea.vmem %s5, %s350
        %s352 = sld [smem:[#allocation5 + %s52]]
        %s353 = sld [smem:[#allocation6 + %s52]]
        %s354 = sld [smem:[#allocation4 + %s52]]
        %v355 = vld [vmem:[%s344] sm:$0xf]
        %v356 = vld [vmem:[%s351] sm:$0xf]
        %v357 = vstv %s352
        %v358 = vmul.f32 %v357, %v355
        %v359 = vstv %s353
        %v360 = vmul.f32 %v359, %v356
        %v361 = vadd.f32 %v358, %v360
        %v362 = vmul.f32 %v357, %v356
        %v363 = vmul.f32 %v359, %v355
        %v364 = vsub.f32 %v362, %v363
        %v365 = vld [vmem:[%s6] sm:$0xff]
        %v366 = vld [vmem:[%s6 + $0x8] sm:$0xff]
        %v367 = vld [vmem:[%s6 + $0x10] sm:$0xff]
        %v368 = vld [vmem:[%s6 + $0x18] sm:$0xff]
        %v369 = vld [vmem:[%s7] sm:$0xff]
        %v370 = vld [vmem:[%s7 + $0x8] sm:$0xff]
        %v371 = vld [vmem:[%s7 + $0x10] sm:$0xff]
        %v372 = vld [vmem:[%s7 + $0x18] sm:$0xff]
        %v373 = vld [vmem:[%s8] sm:$0xff]
        %v374 = vld [vmem:[%s8 + $0x8] sm:$0xff]
        %v375 = vld [vmem:[%s8 + $0x10] sm:$0xff]
        %v376 = vld [vmem:[%s8 + $0x18] sm:$0xff]
        %v377 = vstv %s354
        %v378 = vmul.f32 %v373, %v377
        %v379 = vmul.f32 %v374, %v377
        %v380 = vmul.f32 %v375, %v377
        %v381 = vmul.f32 %v376, %v377
        %v382 = vadd.f32 %v369, %v378
        %v383 = vadd.f32 %v370, %v379
        %v384 = vadd.f32 %v371, %v380
        %v385 = vadd.f32 %v372, %v381
        %387 = vset.pattern.permute.xlu0 0
        %388 = vperm.xlu0 %387, %v382
        %v389 = vpop.permute.xlu0 %388
        %392 = vset.pattern.permute.xlu0 0
        %393 = vperm.xlu0 %392, %v383
        %v394 = vpop.permute.xlu0 %393
        %397 = vset.pattern.permute.xlu0 0
        %398 = vperm.xlu0 %397, %v384
        %v399 = vpop.permute.xlu0 %398
        %402 = vset.pattern.permute.xlu0 0
        %403 = vperm.xlu0 %402, %v385
        %v404 = vpop.permute.xlu0 %403
        %vm406 = vcmask 31744
        %v408 = vsel %vm406, %v365, 0
        %v411 = vsel %vm406, %v366, 0
        %v414 = vsel %vm406, %v367, 0
        %v417 = vsel %vm406, %v368, 0
        %vm419 = vcmask 1043456
        %v421 = vsel %vm419, %v361, 0
        %423 = vmatpush.msra.mxu0 0.0
        %424 = vmatpush.msra.mxu0 0.0
        %425 = vmatpush.msra.mxu0 0.0
        %426 = vmatpush.msra.mxu0 0.0
        %427 = vmatpush.msra.mxu0 0.0
        %428 = vmatpush.msra.mxu0 0.0
        %429 = vmatpush.msra.mxu0 0.0
        %430 = vmatpush.msra.mxu0 0.0
        %431 = vmatpush.msra.mxu0 0.0
        %432 = vmatpush.msra.mxu0 0.0
        %433 = vmatpush.msra.mxu0 0.0
        %434 = vmatpush.msra.mxu0 0.0
        %435 = vmatpush.msra.mxu0 0.0
        %436 = vmatpush.msra.mxu0 0.0
        %437 = vmatpush.msra.mxu0 0.0
        %438 = vmatpush.msra.mxu0 %v421
        %439 = vmatmul.f32.gmra.mxu0 %v408
        %v440 = vpop.f32.mrf.mxu0
        %v441 = vadd.f32 %v389, %v440
        %442 = vmatmul.f32.gmra.mxu0 %v411
        %v443 = vpop.f32.mrf.mxu0
        %v444 = vadd.f32 %v394, %v443
        %445 = vmatmul.f32.gmra.mxu0 %v414
        %v446 = vpop.f32.mrf.mxu0
        %v447 = vadd.f32 %v399, %v446
        %448 = vmatmul.f32.gmra.mxu0 %v417
        %v449 = vpop.f32.mrf.mxu0
        %v450 = vadd.f32 %v404, %v449
        %451 = vdwg.mxu0
        %v452 = vmax.f32 %v441, 0.0
        %v453 = vmax.f32 %v444, 0.0
        %v454 = vmax.f32 %v447, 0.0
        %v455 = vmax.f32 %v450, 0.0
        %v456 = vld [vmem:[%s9] sm:$0xf]
        %v457 = vld [vmem:[%s10] sm:$0xf]
        %459 = vset.pattern.permute.xlu0 0
        %460 = vperm.xlu0 %459, %v457
        %v461 = vpop.permute.xlu0 %460
        %vm463 = vcmask 261120
        %v465 = vsel %vm463, %v456, 0
        %467 = vmatpush.msra.mxu0 0.0
        %468 = vmatpush.msra.mxu0 0.0
        %469 = vmatpush.msra.mxu0 0.0
        %470 = vmatpush.msra.mxu0 0.0
        %471 = vmatpush.msra.mxu0 0.0
        %472 = vmatpush.msra.mxu0 0.0
        %473 = vmatpush.msra.mxu0 0.0
        %474 = vmatpush.msra.mxu0 0.0
        %475 = vmatpush.msra.mxu0 0.0
        %476 = vmatpush.msra.mxu0 0.0
        %477 = vmatpush.msra.mxu0 0.0
        %478 = vmatpush.msra.mxu0 0.0
        %479 = vmatpush.msra.mxu0 %v455
        %480 = vmatpush.msra.mxu0 %v454
        %481 = vmatpush.msra.mxu0 %v453
        %482 = vmatpush.msra.mxu0 %v452
        %483 = vmatmul.f32.gmra.mxu0 %v465
        %v484 = vpop.f32.mrf.mxu0
        %v485 = vadd.f32 %v461, %v484
        %486 = vdwg.mxu0
        %v487 = vsub.f32 %v485, %v364
        %v488 = vmul.f32 %v487, %v487
        %p489 = scmp.eq.s32.totalorder %s53, 0
        // Predicated region
        $region49: #{tpu_custom_call.1} parent=47 // pred_check
          %p490 = pneg %p489
        $region50: #{tpu_custom_call.1} parent=47 // pred_check_branch
          %492 = sbr.rel (%p490) target = $region52
        $region51: #{tpu_custom_call.1} parent=47 // pred_region
          %vm493 = vcmask 125952
          %494 = vst.msk [vmem:[#allocation2] sm:$0xf] %vm493, 0.0
        $region52: #{tpu_custom_call.1} parent=47 // pred_fallthru
          _
        %v495 = vld [vmem:[#allocation2] sm:$0xf]
        %v496 = vadd.f32 %v495, %v488
        %vm497 = vcmask 125952
        %498 = vst.msk [vmem:[#allocation2] sm:$0xf] %vm497, %v496
        // Predicated region
        $region53: #{tpu_custom_call.1} parent=47 // pred_check
          %p499 = pneg %p489
        $region54: #{tpu_custom_call.1} parent=47 // pred_check_branch
          %501 = sbr.rel (%p499) target = $region56
        $region55: #{tpu_custom_call.1} parent=47 // pred_region
          %v502 = vld [vmem:[#allocation2] sm:$0xf]
          %v503 = vsel %vm497, %v502, 0.0
          %504 = vadd.xlane.f32.xlu0 %v503
          %v505 = vpop.xlane.xlu0 %504
          %v506 = vsel %vm419, %v505, 0.0
          %v507 = vrot.slane %v506, 4
          %v508 = vadd.f32 %v506, %v507
          %v509 = vrot.slane %v508, 2
          %v510 = vadd.f32 %v508, %v509
          %v511 = vrot.slane %v510, 1
          %v512 = vadd.f32 %v510, %v511
          %s513 = sld [smem:[#allocation7 + %s52]]
          %s514 = smul.f32 %s513, 0.015625
          %v515 = vstv %s514
          %v516 = vmul.f32 %v515, %v512
          %517 = vst [vmem:[%s337] sm:$0xff] %v516
        $region56: #{tpu_custom_call.1} parent=47 // pred_fallthru
          _
        %s518 = sand.u32 %s229, 1
        %s519 = scalar_lea.sflag [#allocation9], %s518
        %s520 = sand.u32 %s229, 1
        %s521 = smul.addr %s520, 8
        %s522 = scalar_lea.vmem [#allocation8], %s521
        // Predicated region
        $region57: #{tpu_custom_call.1} parent=47 // pred_check
          %p523 = pneg %p239
        $region58: #{tpu_custom_call.1} parent=47 // pred_check_branch
          %525 = sbr.rel (%p523) target = $region60
        $region59: #{tpu_custom_call.1} parent=47 // pred_region
          %527 = vsyncadd %s519, 0
          %s528 = smul.addr %s52, 8
          %s529 = scalar_lea.hbm %s11, %s528
          %s531 = sshll.u32 %s522, 4
          %s532 = int_to_ptr.vmem [resolvable:$true] %s531
          %s533 = sshll.u32 %s529, 4
          %s534 = int_to_ptr.hbm [resolvable:$true] %s533
          %536 = dma.vmem_to_hbm [thread:$0]  %s532, 128, %s534, %s519
        $region60: #{tpu_custom_call.1} parent=47 // pred_fallthru
          _
      $region48: #{tpu_custom_call.1} parent=5 // pred_fallthru
        _
      %p537 = scmp.le.s32.totalorder 2, %s43
      // Predicated region
      $region61: #{tpu_custom_call.1} parent=5 // pred_check
        %p538 = pneg %p537
      $region62: #{tpu_custom_call.1} parent=5 // pred_check_branch
        %540 = sbr.rel (%p538) target = $region64
      $region63: #{tpu_custom_call.1} parent=5 // pred_region
        %s541 = ssub.s32 %s43, 2
        // Predicated region
        $region65: #{tpu_custom_call.1} parent=63 // pred_check
          %p542 = pneg %p245
        $region66: #{tpu_custom_call.1} parent=63 // pred_check_branch
          %544 = sbr.rel (%p542) target = $region68
        $region67: #{tpu_custom_call.1} parent=63 // pred_region
          %s545 = sand.u32 %s230, 1
          %s546 = scalar_lea.sflag [#allocation9], %s545
          %s547 = sand.u32 %s230, 1
          %s548 = smul.addr %s547, 8
          %s549 = scalar_lea.vmem [#allocation8], %s548
          %551 = dma.done %s546, 128
        $region68: #{tpu_custom_call.1} parent=63 // pred_fallthru
          _
      $region64: #{tpu_custom_call.1} parent=5 // pred_fallthru
        _
    $region6: #{tpu_custom_call.1} parent=1 // loop_footer
      %s47 = sadd.s32 1, %s43
    $region7: #{tpu_custom_call.1} parent=1 // loop_footer_branch
      %42 = sbr.rel target = $region3
    $region8: #{tpu_custom_call.1} parent=1 // loop_exit
      _
    %552 = vsyncpa [#allocation9], 1
    %s553 = scalar_lea.sflag [#allocation9], 1
    %554 = vsyncpa %s553, 1

</llo_original>
